<compile_context>
chip_gen: v7x
topology: tpu7x:2x2x1
jax: 0.10.0
libtpu: 0.0.40
codegen_flags: <defaults>
</compile_context>

<pallas_src>
import jax
import jax.numpy as jnp
from jax.experimental import pallas as pl
from jax.experimental.pallas import tpu as pltpu


def _round_up(x, m):
    return ((x + m - 1) // m) * m


def _vmem_budget_bytes():
    """(budget, physical) scoped-VMEM bytes for tile selection on this chip."""
    cap = 64 * 1024 * 1024  # conservative default: assume v7x-sized VMEM
    try:
        info = pltpu.get_tpu_info()
        cap = int(getattr(info, "vmem_capacity_bytes", cap) or cap)
    except Exception:
        pass
    # Leave ~16 MiB headroom for Mosaic internal scratch, semaphores and the
    # lane-padded output buffers; cap at 112 MiB so 128 MiB parts keep slack.
    budget = max(32 * 1024 * 1024, min(cap - 16 * 1024 * 1024, 112 * 1024 * 1024))
    return budget, cap


# ----------------------------------------------------------------------------
# Kernels
# ----------------------------------------------------------------------------
def _mlp_kernel_resident(x_ref, w1_ref, b1_ref, w2_ref, b2_ref, o_ref):
    """Grid = (batch_tiles,). Whole reduction resident; no accumulator."""
    # MXU matmul with f32 accumulation, bias + tanh in f32 (v5e VPU/EUP have
    # no bf16).  No scratch round trip: h is produced straight from the dot.
    h = jnp.tanh(
        jnp.dot(x_ref[...], w1_ref[...], preferred_element_type=jnp.float32)
        + b1_ref[...])                                              # (TB, F)
    # Second linear (out_features = 1): VPU multiply + lane reduction on a
    # lane-dense (1, F) w2 row instead of a 1-column MXU matmul.
    out = jnp.sum(h * w2_ref[...], axis=-1, keepdims=True)          # (TB, 1)
    o_ref[...] = (out + b2_ref[0, 0]).astype(o_ref.dtype)           # b2 in SMEM


def _mlp_kernel_ktiled(x_ref, w1_ref, b1_ref, w2_ref, b2_ref, o_ref, acc_ref):
    """Grid = (batch_tiles, k_tiles); acc_ref accumulates x @ W1 over k."""
    k = pl.program_id(1)
    partial = jnp.dot(x_ref[...], w1_ref[...], preferred_element_type=jnp.float32)

    @pl.when(k == 0)
    def _first():
        acc_ref[...] = partial            # direct store: no zero-init pass

    @pl.when(k > 0)
    def _accum():
        acc_ref[...] += partial

    @pl.when(k == pl.num_programs(1) - 1)
    def _finalize():
        h = jnp.tanh(acc_ref[...] + b1_ref[...])                     # (TB, F)
        out = jnp.sum(h * w2_ref[...], axis=-1, keepdims=True)       # (TB, 1)
        o_ref[...] = (out + b2_ref[0, 0]).astype(o_ref.dtype)


# ----------------------------------------------------------------------------
# Wrapper
# ----------------------------------------------------------------------------
def my_linear_forward(x, w1, b1, w2, b2, *, mxu_dtype=jnp.float32,
                      tile_b=None, tile_k=None):
    """x: (B, F) , w1: (F, F) stored (in, out), b1: (F,), w2: (F, 1), b2: (1,).

    Returns (B, 1) float32.
    """
    B, F = x.shape
    assert w1.shape == (F, F), w1.shape
    b1_row = jnp.reshape(b1, (1, F)).astype(jnp.float32)
    w2_row = jnp.reshape(w2, (1, F)).astype(jnp.float32)
    b2_s = jnp.reshape(b2, (1, 1)).astype(jnp.float32)
    # MXU operands: cast BOTH x and W1 in the wrapper (bf16 halves HBM traffic
    # and removes the per-tile VPU cast inside the kernel).
    w1 = w1.astype(mxu_dtype)
    x = x.astype(mxu_dtype)
    item = jnp.dtype(mxu_dtype).itemsize

    budget, vmem_cap = _vmem_budget_bytes()

    def _cost(tb, tk, nk, w1_bufs):
        c = (w1_bufs * tk * F * item          # W1 tiles
             + 2 * tb * tk * item             # x tiles (double-buffered)
             + 2 * tb * 128 * 4               # (tb,1) out blocks, lane-padded
             + 4 * F * 4)                     # b1 / w2 rows
        if nk > 1:
            c += tb * F * 4                   # resident f32 accumulator
        return c

    # --- tile_b candidates --------------------------------------------------
    b_cap = _round_up(B, 8)
    if tile_b is not None:
        tb_candidates = [_round_up(int(tile_b), 8)]
    elif b_cap <= 1024:
        # One batch tile when B is modest: no padding waste, and W1 is streamed
        # exactly once even if K ends up tiled (nb == 1).
        tb_candidates = [b_cap] + [t for t in (512, 384, 256, 128, 64, 32, 16, 8)
                                   if t < b_cap]
    else:
        # Large B: big tiles amortize W1 re-streaming (roofline: >=384..640
        # rows on v6e/v7x when K is tiled); shrink only if VMEM demands it.
        tb_candidates = [1024, 768, 512, 384, 256, 128, 64]

    # --- tile_k candidates ----------------------------------------------------
    if tile_k is not None:
        tk_user = int(tile_k)
        assert F % tk_user == 0 and (tk_user == F or tk_user % 128 == 0), (F, tk_user)
        tk_full = [tk_user] if tk_user == F else []
        tk_tiled = [] if tk_user == F else [tk_user]
    else:
        tk_full = [F]
        # Multiples of 256 keep the v6e/v7x 2x256x256 MXU full; 128 only as a
        # last-resort divisor (native on v5e's 4x128x128 MXU).
        tk_tiled = [t for t in (4096, 2048, 1024, 512, 256) if F % t == 0 and t < F]
        if not tk_tiled and F > 128 and F % 128 == 0:
            tk_tiled = [128]

    # --- budget-driven selection ---------------------------------------------
    chosen = None
    # Pass 1: whole reduction resident (nk == 1).  W1's index map is constant,
    # so it is DMA'd once for the entire kernel and single-buffered.
    for tb_c in tb_candidates:
        for tk_c in tk_full:
            if _cost(tb_c, tk_c, 1, w1_bufs=1) <= budget:
                chosen = (tb_c, tk_c, 1)
                break
        if chosen:
            break
    if chosen is None:
        # Pass 2: K-tiled.  tb first (amortizes W1 re-streaming), then the
        # deepest K band that still fits with double-buffered W1 + f32 acc.
        for tb_c in tb_candidates:
            for tk_c in tk_tiled:
                if _cost(tb_c, tk_c, F // tk_c, w1_bufs=2) <= budget:
                    chosen = (tb_c, tk_c, F // tk_c)
                    break
            if chosen:
                break
    if chosen is None:
        # Degenerate fallback (awkward divisibility at huge F): smallest
        # candidates; correctness preserved, the compiler may spill.
        tb_c = tb_candidates[-1]
        tk_c = tk_tiled[-1] if tk_tiled else (tk_full[0] if tk_full else F)
        chosen = (tb_c, tk_c, F // tk_c)

    tb, tk, nk = chosen

    # --- pad batch to a tile multiple -----------------------------------------
    b_pad = _round_up(B, tb)
    if b_pad != B:
        x = jnp.pad(x, ((0, b_pad - B), (0, 0)))
    nb = b_pad // tb

    # --- scoped VMEM limits, derived together with the tile choice ------------
    est = _cost(tb, tk, nk, w1_bufs=1 if nk == 1 else 2)
    vmem_limit = int(min(max(int(est * 1.3), 32 * 1024 * 1024), budget))
    est_fb = _cost(tb, tk, nk, w1_bufs=2)          # if single-buffering is refused
    vmem_limit_fb = int(min(max(int(est_fb * 1.25), 32 * 1024 * 1024),
                            max(budget, vmem_cap - 8 * 1024 * 1024)))

    def _const_spec(shape, index_map, single_buffer):
        # Single-buffer constant-index blocks (resident W1 / b1 / w2): halves
        # the dominant VMEM term.  Falls back cleanly if unsupported.
        if single_buffer:
            try:
                return pl.BlockSpec(shape, index_map, pipeline_mode=pl.Buffered(1))
            except Exception:
                pass
        return pl.BlockSpec(shape, index_map)

    def _build(single_buffer, limit):
        if nk == 1:
            grid = (nb,)
            in_specs = [
                pl.BlockSpec((tb, F), lambda i: (i, 0)),                # x
                _const_spec((F, F), lambda i: (0, 0), single_buffer),   # W1 resident
                _const_spec((1, F), lambda i: (0, 0), single_buffer),   # b1 row
                _const_spec((1, F), lambda i: (0, 0), single_buffer),   # w2 row
                pl.BlockSpec(memory_space=pltpu.MemorySpace.SMEM),      # b2 scalar
            ]
            out_spec = pl.BlockSpec((tb, 1), lambda i: (i, 0))
            scratch = []
            kernel = _mlp_kernel_resident
            dims = ("parallel",)
        else:
            grid = (nb, nk)                                             # K last
            in_specs = [
                pl.BlockSpec((tb, tk), lambda i, k: (i, k)),            # x
                pl.BlockSpec((tk, F), lambda i, k: (k, 0)),             # W1 band
                pl.BlockSpec((1, F), lambda i, k: (0, 0)),              # b1 row
                pl.BlockSpec((1, F), lambda i, k: (0, 0)),              # w2 row
                pl.BlockSpec(memory_space=pltpu.MemorySpace.SMEM),      # b2 scalar
            ]
            out_spec = pl.BlockSpec((tb, 1), lambda i, k: (i, 0))
            scratch = [pltpu.VMEM((tb, F), jnp.float32)]
            kernel = _mlp_kernel_ktiled
            dims = ("parallel", "arbitrary")
        # NOTE(perf): output stays as (tb, 1) blocks.  It is only B*4 bytes
        # (1/F of the x read); a lane-dense slab would need a sublane->lane
        # relayout of per-row scalars, so masked stores here are cheaper.
        return pl.pallas_call(
            kernel,
            out_shape=jax.ShapeDtypeStruct((b_pad, 1), jnp.float32),
            grid_spec=pltpu.PrefetchScalarGridSpec(
                num_scalar_prefetch=0,
                grid=grid,
                in_specs=in_specs,
                out_specs=out_spec,
                scratch_shapes=scratch),
            compiler_params=pltpu.CompilerParams(
                # batch axis "parallel" -> megacore sharding on v7x; neutral
                # on v5e/v6e.  Reduction axis stays "arbitrary".
                dimension_semantics=dims,
                vmem_limit_bytes=limit),
        )

    args = (x, w1, b1_row, w2_row, b2_s)
    try:
        out_padded = _build(single_buffer=(nk == 1), limit=vmem_limit)(*args)
    except Exception:
        if nk != 1:
            raise
        # Retry without single-buffered weights (and a larger VMEM limit that
        # accounts for W1's second buffer).
        out_padded = _build(single_buffer=False, limit=vmem_limit_fb)(*args)

    return out_padded[:B]


# ----------------------------------------------------------------------------
# Params / reference
# ----------------------------------------------------------------------------
def init_params(key, size_in):
    """Deterministic init matching nn.Linear's U(-1/sqrt(fan_in), 1/sqrt(fan_in))."""
    dim2 = 2 * size_in
    k1, k2, k3, k4 = jax.random.split(key, 4)
    bound = 1.0 / jnp.sqrt(dim2)
    # stored as (in, out) — the transpose of PyTorch's (out, in) weight
    w1 = jax.random.uniform(k1, (dim2, dim2), jnp.float32, -bound, bound)
    b1 = jax.random.uniform(k2, (dim2,), jnp.float32, -bound, bound)
    w2 = jax.random.uniform(k3, (dim2, 1), jnp.float32, -bound, bound)
    b2 = jax.random.uniform(k4, (1,), jnp.float32, -bound, bound)
    return w1, b1, w2, b2


def reference_forward(x, w1, b1, w2, b2):
    h = jnp.tanh(x @ w1 + b1)
    return h @ w2 + b2


if __name__ == "__main__":
    key = jax.random.PRNGKey(0)
    k_x, k_p, k_x2, k_p2 = jax.random.split(key, 4)

    # --- test 1: module demo shape (dim=16 -> 32 features), f32, resident W1 --
    size_in, batch = 16, 8
    x = jax.random.normal(k_x, (batch, 2 * size_in), jnp.float32)
    w1, b1, w2, b2 = init_params(k_p, size_in)
    out = jax.block_until_ready(my_linear_forward(x, w1, b1, w2, b2))
    ref = reference_forward(x, w1, b1, w2, b2)
    assert out.shape == (batch, 1), out.shape
    assert jnp.allclose(out, ref, atol=1e-5, rtol=1e-5), "f32 path mismatch"

    # --- test 2: bf16 MXU path (f32 accumulate) -------------------------------
    # bf16 error grows ~sqrt(F); F=32 here so a fixed 5e-2 tolerance is ample.
    out_bf16 = jax.block_until_ready(
        my_linear_forward(x, w1, b1, w2, b2, mxu_dtype=jnp.bfloat16))
    assert jnp.allclose(out_bf16, ref, atol=5e-2, rtol=5e-2), "bf16 path mismatch"

    # --- test 3: batch tiling + padding + K-tiled accumulator path ------------
    size_in2, batch2 = 256, 200        # F = 512, B not a tile multiple
    x2 = jax.random.normal(k_x2, (batch2, 2 * size_in2), jnp.float32)
    w1b, b1b, w2b, b2b = init_params(k_p2, size_in2)
    out2 = jax.block_until_ready(
        my_linear_forward(x2, w1b, b1b, w2b, b2b, tile_b=64, tile_k=256))
    ref2 = reference_forward(x2, w1b, b1b, w2b, b2b)
    assert out2.shape == (batch2, 1), out2.shape
    assert jnp.allclose(out2, ref2, atol=5e-3, rtol=5e-3), "tiled path mismatch"

    # --- test 4: auto tile selection (no overrides), non-aligned batch --------
    out3 = jax.block_until_ready(my_linear_forward(x2, w1b, b1b, w2b, b2b))
    assert jnp.allclose(out3, ref2, atol=5e-3, rtol=5e-3), "auto-tile mismatch"

    print("KERNEL_OK")
</pallas_src>

<mosaic_0001>
module attributes {stable_mosaic.version = 11 : i64} {
  func.func @_mlp_kernel_resident(%arg0: i32, %arg1: memref<8x32xf32, #tpu.memory_space<vmem>>, %arg2: memref<32x32xf32, #tpu.memory_space<vmem>>, %arg3: memref<1x32xf32, #tpu.memory_space<vmem>>, %arg4: memref<1x32xf32, #tpu.memory_space<vmem>>, %arg5: memref<1x1xf32, #tpu.memory_space<smem>>, %arg6: memref<8x1xf32, #tpu.memory_space<vmem>>) attributes {dimension_semantics = [#tpu.dimension_semantics<parallel>], iteration_bounds = array<i64: 1>, scalar_prefetch = 0 : i64, scratch_operands = 0 : i64, tpu.core_type = #tpu.core_type<tc>, window_params = [{transform_indices = @transform_0, window_bounds = array<i64: 8, 32>}, {pipeline_mode = #tpu.pipeline_mode<synchronous>, transform_indices = @transform_1, window_bounds = array<i64: 32, 32>}, {pipeline_mode = #tpu.pipeline_mode<synchronous>, transform_indices = @transform_2, window_bounds = array<i64: 1, 32>}, {pipeline_mode = #tpu.pipeline_mode<synchronous>, transform_indices = @transform_3, window_bounds = array<i64: 1, 32>}, {transform_indices = @transform_4, window_bounds = array<i64: 1, 1>}, {transform_indices = @transform_5, window_bounds = array<i64: 8, 1>}]} {
    %c0 = arith.constant 0 : index
    %c0_0 = arith.constant 0 : index
    %0 = vector.load %arg1[%c0, %c0_0] : memref<8x32xf32, #tpu.memory_space<vmem>>, vector<8x32xf32>
    %c0_1 = arith.constant 0 : index
    %c0_2 = arith.constant 0 : index
    %1 = vector.load %arg2[%c0_1, %c0_2] : memref<32x32xf32, #tpu.memory_space<vmem>>, vector<32x32xf32>
    %cst = arith.constant dense<0.000000e+00> : vector<8x32xf32>
    %2 = tpu.matmul %0, %1, %cst {dimension_numbers = #tpu.dot_dimension_numbers<[1], [0], [0], [1], [0, 0, 1, 1], [], []>} : vector<8x32xf32>, vector<32x32xf32>, vector<8x32xf32> -> vector<8x32xf32>
    %c0_3 = arith.constant 0 : index
    %c0_4 = arith.constant 0 : index
    %3 = vector.load %arg3[%c0_3, %c0_4] : memref<1x32xf32, #tpu.memory_space<vmem>>, vector<1x32xf32>
    %4 = vector.broadcast %3 : vector<1x32xf32> to vector<8x32xf32>
    %5 = arith.addf %2, %4 : vector<8x32xf32>
    %6 = math.tanh %5 : vector<8x32xf32>
    %c0_5 = arith.constant 0 : index
    %c0_6 = arith.constant 0 : index
    %7 = vector.load %arg4[%c0_5, %c0_6] : memref<1x32xf32, #tpu.memory_space<vmem>>, vector<1x32xf32>
    %8 = vector.broadcast %7 : vector<1x32xf32> to vector<8x32xf32>
    %9 = arith.mulf %6, %8 : vector<8x32xf32>
    %cst_7 = arith.constant dense<0.000000e+00> : vector<8xf32>
    %10 = vector.multi_reduction <add>, %9, %cst_7 [1] : vector<8x32xf32> to vector<8xf32>
    %11 = vector.shape_cast %10 : vector<8xf32> to vector<8x1xf32>
    %c0_8 = arith.constant 0 : index
    %c0_9 = arith.constant 0 : index
    %12 = memref.load %arg5[%c0_8, %c0_9] : memref<1x1xf32, #tpu.memory_space<smem>>
    %13 = vector.broadcast %12 : f32 to vector<8x1xf32>
    %14 = arith.addf %11, %13 : vector<8x1xf32>
    %c0_10 = arith.constant 0 : index
    %c0_11 = arith.constant 0 : index
    %15 = vector.load %arg6[%c0_10, %c0_11] : memref<8x1xf32, #tpu.memory_space<vmem>>, vector<8x1xf32>
    tpu.vector_store %arg6[%c0_10, %c0_11], %14 {strides = array<i32>} : memref<8x1xf32, #tpu.memory_space<vmem>>, vector<8x1xf32>,
    return
  }
  func.func @transform_0(%arg0: i32) -> (i32, i32) {
    %c0_i32 = arith.constant 0 : i32
    %c0_i32_0 = arith.constant 0 : i32
    return %arg0, %c0_i32 : i32, i32
  }
  func.func @transform_1(%arg0: i32) -> (i32, i32) {
    %c0_i32 = arith.constant 0 : i32
    %c0_i32_0 = arith.constant 0 : i32
    %c0_i32_1 = arith.constant 0 : i32
    return %c0_i32, %c0_i32_0 : i32, i32
  }
  func.func @transform_2(%arg0: i32) -> (i32, i32) {
    %c0_i32 = arith.constant 0 : i32
    %c0_i32_0 = arith.constant 0 : i32
    %c0_i32_1 = arith.constant 0 : i32
    return %c0_i32, %c0_i32_0 : i32, i32
  }
  func.func @transform_3(%arg0: i32) -> (i32, i32) {
    %c0_i32 = arith.constant 0 : i32
    %c0_i32_0 = arith.constant 0 : i32
    %c0_i32_1 = arith.constant 0 : i32
    return %c0_i32, %c0_i32_0 : i32, i32
  }
  func.func @transform_4(%arg0: i32) -> (i32, i32) {
    %c0_i32 = arith.constant 0 : i32
    %c0_i32_0 = arith.constant 0 : i32
    %c0_i32_1 = arith.constant 0 : i32
    return %c0_i32, %c0_i32_0 : i32, i32
  }
  func.func @transform_5(%arg0: i32) -> (i32, i32) {
    %c0_i32 = arith.constant 0 : i32
    %c0_i32_0 = arith.constant 0 : i32
    return %arg0, %c0_i32 : i32, i32
  }
}

module attributes {stable_mosaic.version = 11 : i64} {
  func.func @_mlp_kernel_resident(%arg0: i32, %arg1: memref<8x32xf32, #tpu.memory_space<vmem>>, %arg2: memref<32x32xf32, #tpu.memory_space<vmem>>, %arg3: memref<1x32xf32, #tpu.memory_space<vmem>>, %arg4: memref<1x32xf32, #tpu.memory_space<vmem>>, %arg5: memref<1x1xf32, #tpu.memory_space<smem>>, %arg6: memref<8x1xf32, #tpu.memory_space<vmem>>) attributes {dimension_semantics = [#tpu.dimension_semantics<parallel>], iteration_bounds = array<i64: 1>, scalar_prefetch = 0 : i64, scratch_operands = 0 : i64, tpu.core_type = #tpu.core_type<tc>, window_params = [{transform_indices = @transform_0, window_bounds = array<i64: 8, 32>}, {pipeline_mode = #tpu.pipeline_mode<synchronous>, transform_indices = @transform_1, window_bounds = array<i64: 32, 32>}, {pipeline_mode = #tpu.pipeline_mode<synchronous>, transform_indices = @transform_2, window_bounds = array<i64: 1, 32>}, {pipeline_mode = #tpu.pipeline_mode<synchronous>, transform_indices = @transform_3, window_bounds = array<i64: 1, 32>}, {transform_indices = @transform_4, window_bounds = array<i64: 1, 1>}, {transform_indices = @transform_5, window_bounds = array<i64: 8, 1>}]} {
    %c0 = arith.constant 0 : index
    %c0_0 = arith.constant 0 : index
    %0 = vector.load %arg1[%c0, %c0_0] : memref<8x32xf32, #tpu.memory_space<vmem>>, vector<8x32xf32>
    %c0_1 = arith.constant 0 : index
    %c0_2 = arith.constant 0 : index
    %1 = vector.load %arg2[%c0_1, %c0_2] : memref<32x32xf32, #tpu.memory_space<vmem>>, vector<32x32xf32>
    %cst = arith.constant dense<0.000000e+00> : vector<8x32xf32>
    %2 = tpu.matmul %0, %1, %cst {dimension_numbers = #tpu.dot_dimension_numbers<[1], [0], [0], [1], [0, 0, 1, 1], [], []>} : vector<8x32xf32>, vector<32x32xf32>, vector<8x32xf32> -> vector<8x32xf32>
    %c0_3 = arith.constant 0 : index
    %c0_4 = arith.constant 0 : index
    %3 = vector.load %arg3[%c0_3, %c0_4] : memref<1x32xf32, #tpu.memory_space<vmem>>, vector<1x32xf32>
    %4 = vector.broadcast %3 : vector<1x32xf32> to vector<8x32xf32>
    %5 = arith.addf %2, %4 : vector<8x32xf32>
    %6 = math.tanh %5 : vector<8x32xf32>
    %c0_5 = arith.constant 0 : index
    %c0_6 = arith.constant 0 : index
    %7 = vector.load %arg4[%c0_5, %c0_6] : memref<1x32xf32, #tpu.memory_space<vmem>>, vector<1x32xf32>
    %8 = vector.broadcast %7 : vector<1x32xf32> to vector<8x32xf32>
    %9 = arith.mulf %6, %8 : vector<8x32xf32>
    %cst_7 = arith.constant dense<0.000000e+00> : vector<8xf32>
    %10 = vector.multi_reduction <add>, %9, %cst_7 [1] : vector<8x32xf32> to vector<8xf32>
    %11 = vector.shape_cast %10 : vector<8xf32> to vector<8x1xf32>
    %c0_8 = arith.constant 0 : index
    %c0_9 = arith.constant 0 : index
    %12 = memref.load %arg5[%c0_8, %c0_9] : memref<1x1xf32, #tpu.memory_space<smem>>
    %13 = vector.broadcast %12 : f32 to vector<8x1xf32>
    %14 = arith.addf %11, %13 : vector<8x1xf32>
    %c0_10 = arith.constant 0 : index
    %c0_11 = arith.constant 0 : index
    %15 = vector.load %arg6[%c0_10, %c0_11] : memref<8x1xf32, #tpu.memory_space<vmem>>, vector<8x1xf32>
    tpu.vector_store %arg6[%c0_10, %c0_11], %14 {strides = array<i32>} : memref<8x1xf32, #tpu.memory_space<vmem>>, vector<8x1xf32>,
    return
  }
  func.func @transform_0(%arg0: i32) -> (i32, i32) {
    %c0_i32 = arith.constant 0 : i32
    %c0_i32_0 = arith.constant 0 : i32
    return %arg0, %c0_i32 : i32, i32
  }
  func.func @transform_1(%arg0: i32) -> (i32, i32) {
    %c0_i32 = arith.constant 0 : i32
    %c0_i32_0 = arith.constant 0 : i32
    %c0_i32_1 = arith.constant 0 : i32
    return %c0_i32, %c0_i32_0 : i32, i32
  }
  func.func @transform_2(%arg0: i32) -> (i32, i32) {
    %c0_i32 = arith.constant 0 : i32
    %c0_i32_0 = arith.constant 0 : i32
    %c0_i32_1 = arith.constant 0 : i32
    return %c0_i32, %c0_i32_0 : i32, i32
  }
  func.func @transform_3(%arg0: i32) -> (i32, i32) {
    %c0_i32 = arith.constant 0 : i32
    %c0_i32_0 = arith.constant 0 : i32
    %c0_i32_1 = arith.constant 0 : i32
    return %c0_i32, %c0_i32_0 : i32, i32
  }
  func.func @transform_4(%arg0: i32) -> (i32, i32) {
    %c0_i32 = arith.constant 0 : i32
    %c0_i32_0 = arith.constant 0 : i32
    %c0_i32_1 = arith.constant 0 : i32
    return %c0_i32, %c0_i32_0 : i32, i32
  }
  func.func @transform_5(%arg0: i32) -> (i32, i32) {
    %c0_i32 = arith.constant 0 : i32
    %c0_i32_0 = arith.constant 0 : i32
    return %arg0, %c0_i32 : i32, i32
  }
}

</mosaic_0001>

<llo_original>
// kernel: tpu_custom_call.1
$region0: #{tpu_custom_call.1}
  #allocation0 [shape = 'u32[]', space=smem, size = 0x4, offset = 0x4, fixed_abs, tag = 'smem constant byte address 0x4 - core index']
  #allocation1 [shape = 'u32[144,128]{1,0:T(1,128)}', space=vmem, size = 0x12000, scoped, tag = 'internal scratch']
  #allocation2 [shape = 'f32[1,1]{1,0:T(1,128)S(6)}', space=smem, size = 0x200, scoped, tag = 'scoped memory for tpu_custom_call.1']
  %s0 = inlined_call_operand.hbm [shape: f32[8,32], index: 0, kind: input, shape index: {}]
  %s1 = inlined_call_operand.hbm [shape: f32[32,32], index: 1, kind: input, shape index: {}]
  %s2 = inlined_call_operand.vmem [shape: f32[1,32], index: 2, kind: input, shape index: {}]
  %s3 = inlined_call_operand.vmem [shape: f32[1,32], index: 3, kind: input, shape index: {}]
  %s4 = inlined_call_operand.<no memory space> [shape: f32[1,1], index: 4, kind: input, shape index: {}]
  %s5 = inlined_call_operand.vmem [shape: f32[8,1], index: 5, kind: output, shape index: {}]
  %s6 = sld [smem:[#allocation0]]
  $region38: #{tpu_custom_call.1} parent=0
    _
  %s8 = ssub.s32 1, %s6
  %s9 = scalar_select 0, %s8, %s6
  %10 = sst [smem:[#allocation2]] %s4
  $region1: #{tpu_custom_call.1} parent=0
    #allocation3 [shape = 'u8[4096]{0}', space=vmem, size = 0x1000, scoped, tag = 'input window, operand 0, single buffered']
    #allocation4 [shape = 's32[1]{0}', space=sflag, size = 0x4, scoped, tag = 'scoped memory for tpu_custom_call.1']
    #allocation5 [shape = 'u8[16384]{0}', space=vmem, size = 0x4000, scoped, tag = 'input window, operand 1, single buffered']
    #allocation6 [shape = 's32[1]{0}', space=sflag, size = 0x4, scoped, tag = 'scoped memory for tpu_custom_call.1']
    %11 = vsyncpa [#allocation4], 0
    %12 = vsyncpa [#allocation6], 0
    // Predicated region
    $region2: #{tpu_custom_call.1} parent=1 // pred_check
      _
    $region3: #{tpu_custom_call.1} parent=1 // pred_check_branch
      %14 = sbr.rel (0) target = $region5
    $region4: #{tpu_custom_call.1} parent=1 // pred_region
      %s16 = ssub.s32 128, 128
      %17 = vsyncadd [#allocation4], %s16
      %s19 = sshll.u32 [#allocation3], 4
      %s20 = int_to_ptr.vmem [resolvable:$true] %s19
      %22 = dma.hbm_to_vmem [thread:$0]  %s0, 128, %s20, [#allocation4]
    $region5: #{tpu_custom_call.1} parent=1 // pred_fallthru
      _
    // Predicated region
    $region6: #{tpu_custom_call.1} parent=1 // pred_check
      _
    $region7: #{tpu_custom_call.1} parent=1 // pred_check_branch
      %24 = sbr.rel (0) target = $region9
    $region8: #{tpu_custom_call.1} parent=1 // pred_region
      %s26 = ssub.s32 512, 512
      %27 = vsyncadd [#allocation6], %s26
      %s28 = sshll.u32 [#allocation5], 4
      %s29 = int_to_ptr.vmem [resolvable:$true] %s28
      %34 = dma.hbm_to_vmem [thread:$0]  %s1, 512, %s29, [#allocation6], 128, 128, 8
    $region9: #{tpu_custom_call.1} parent=1 // pred_fallthru
      _
    // Predicated region
    $region10: #{tpu_custom_call.1} parent=1 // pred_check
      _
    $region11: #{tpu_custom_call.1} parent=1 // pred_check_branch
      %36 = sbr.rel (0) target = $region13
    $region12: #{tpu_custom_call.1} parent=1 // pred_region
      _
    $region13: #{tpu_custom_call.1} parent=1 // pred_fallthru
      _
    // Predicated region
    $region14: #{tpu_custom_call.1} parent=1 // pred_check
      _
    $region15: #{tpu_custom_call.1} parent=1 // pred_check_branch
      %38 = sbr.rel (0) target = $region17
    $region16: #{tpu_custom_call.1} parent=1 // pred_region
      _
    $region17: #{tpu_custom_call.1} parent=1 // pred_fallthru
      _
    // Predicated region
    $region18: #{tpu_custom_call.1} parent=1 // pred_check
      _
    $region19: #{tpu_custom_call.1} parent=1 // pred_check_branch
      %40 = sbr.rel (0) target = $region21
    $region20: #{tpu_custom_call.1} parent=1 // pred_region
      _
    $region21: #{tpu_custom_call.1} parent=1 // pred_fallthru
      _
    // Predicated region
    $region22: #{tpu_custom_call.1} parent=1 // pred_check
      _
    $region23: #{tpu_custom_call.1} parent=1 // pred_check_branch
      %42 = sbr.rel (0) target = $region25
    $region24: #{tpu_custom_call.1} parent=1 // pred_region
      %43 = dma.done [#allocation4], 128
    $region25: #{tpu_custom_call.1} parent=1 // pred_fallthru
      _
    // Predicated region
    $region26: #{tpu_custom_call.1} parent=1 // pred_check
      _
    $region27: #{tpu_custom_call.1} parent=1 // pred_check_branch
      %45 = sbr.rel (0) target = $region29
    $region28: #{tpu_custom_call.1} parent=1 // pred_region
      %46 = dma.done [#allocation6], 512
    $region29: #{tpu_custom_call.1} parent=1 // pred_fallthru
      _
    %v47 = vld [vmem:[#allocation3] sm:$0xff]
    %v48 = vld [vmem:[#allocation5] sm:$0xff]
    %v49 = vld [vmem:[#allocation5 + $0x8] sm:$0xff]
    %v50 = vld [vmem:[#allocation5 + $0x10] sm:$0xff]
    %v51 = vld [vmem:[#allocation5 + $0x18] sm:$0xff]
    %v52 = vld [vmem:[%s2] sm:$0x1]
    %v54 = vlaneseq
    %v55 = vshrl.u32 %v54, 7
    %v56 = vsub.s32 0, %v55
    %v57 = vrot.slane %v52, %v56
    %vm59 = vcmask 261120
    %v61 = vsel %vm59, %v47, 0
    %63 = vmatprep.subr.mxu0 0.0
    %64 = vmatpush1.msra.mxu0 %v48
    %65 = vmatprep.subr.mxu0 0.0
    %66 = vmatpush1.msra.mxu0 %v49
    %67 = vmatprep.subr.mxu0 0.0
    %68 = vmatpush1.msra.mxu0 %v50
    %69 = vmatprep.subr.mxu0 0.0
    %70 = vmatpush1.msra.mxu0 %v51
    %71 = vmatprep.subr.mxu0 0.0
    %72 = vmatpush1.msra.mxu0 0.0
    %73 = vmatprep.subr.mxu0 0.0
    %74 = vmatpush1.msra.mxu0 0.0
    %75 = vmatprep.subr.mxu0 0.0
    %76 = vmatpush1.msra.mxu0 0.0
    %77 = vmatprep.subr.mxu0 0.0
    %78 = vmatpush1.msra.mxu0 0.0
    %79 = vmatprep.subr.mxu0 0.0
    %80 = vmatpush1.msra.mxu0 0.0
    %81 = vmatprep.subr.mxu0 0.0
    %82 = vmatpush1.msra.mxu0 0.0
    %83 = vmatprep.subr.mxu0 0.0
    %84 = vmatpush1.msra.mxu0 0.0
    %85 = vmatprep.subr.mxu0 0.0
    %86 = vmatpush1.msra.mxu0 0.0
    %87 = vmatprep.subr.mxu0 0.0
    %88 = vmatpush1.msra.mxu0 0.0
    %89 = vmatprep.subr.mxu0 0.0
    %90 = vmatpush1.msra.mxu0 0.0
    %91 = vmatprep.subr.mxu0 0.0
    %92 = vmatpush1.msra.mxu0 0.0
    %93 = vmatprep.subr.mxu0 0.0
    %94 = vmatpush1.msra.mxu0 0.0
    %95 = vmatprep.subr.mxu0 0.0
    %96 = vmatpush1.msra.mxu0 0.0
    %97 = vmatprep.subr.mxu0 0.0
    %98 = vmatpush1.msra.mxu0 0.0
    %99 = vmatprep.subr.mxu0 0.0
    %100 = vmatpush1.msra.mxu0 0.0
    %101 = vmatprep.subr.mxu0 0.0
    %102 = vmatpush1.msra.mxu0 0.0
    %103 = vmatprep.subr.mxu0 0.0
    %104 = vmatpush1.msra.mxu0 0.0
    %105 = vmatprep.subr.mxu0 0.0
    %106 = vmatpush1.msra.mxu0 0.0
    %107 = vmatprep.subr.mxu0 0.0
    %108 = vmatpush1.msra.mxu0 0.0
    %109 = vmatprep.subr.mxu0 0.0
    %110 = vmatpush1.msra.mxu0 0.0
    %111 = vmatprep.subr.mxu0 0.0
    %112 = vmatpush1.msra.mxu0 0.0
    %113 = vmatprep.subr.mxu0 0.0
    %114 = vmatpush1.msra.mxu0 0.0
    %115 = vmatprep.subr.mxu0 0.0
    %116 = vmatpush1.msra.mxu0 0.0
    %117 = vmatprep.subr.mxu0 0.0
    %118 = vmatpush1.msra.mxu0 0.0
    %119 = vmatprep.subr.mxu0 0.0
    %120 = vmatpush1.msra.mxu0 0.0
    %121 = vmatprep.subr.mxu0 0.0
    %122 = vmatpush1.msra.mxu0 0.0
    %123 = vmatprep.subr.mxu0 0.0
    %124 = vmatpush1.msra.mxu0 0.0
    %125 = vmatprep.subr.mxu0 0.0
    %126 = vmatpush1.msra.mxu0 0.0
    %127 = vmatprep.mubr.f32.mxu0 0.0
    %128 = vmatmul.mubr.f32.gmra.mrb[0].mxu0 %v61
    %v129 = vpop.f32.mrb[0].mxu0
    %v130 = vadd.f32 %v57, %v129
    %v131 = vpop.f32.mrb[0].mxu0
    %132 = vdwg.mxu0
    %v133 = vtanh.pop %v130
    %v134 = vld [vmem:[%s3] sm:$0x1]
    %v136 = vlaneseq
    %v137 = vshrl.u32 %v136, 7
    %v138 = vsub.s32 0, %v137
    %v139 = vrot.slane %v134, %v138
    %v141 = vmul.f32 %v133, %v139
    %v142 = vsel %vm59, %v141, 0.0
    %143 = vadd.xlane.f32.xlu0 %v142
    %v144 = vpop.xlane.xlu0 %143
    %s145 = sld [smem:[#allocation2]]
    %v146 = vstv %s145
    %v147 = vadd.f32 %v144, %v146
    %vm148 = vcmask 7168
    %149 = vst.msk [vmem:[%s5] sm:$0xff] %vm148, %v147
    // Predicated region
    $region30: #{tpu_custom_call.1} parent=1 // pred_check
      _
    $region31: #{tpu_custom_call.1} parent=1 // pred_check_branch
      %151 = sbr.rel (0) target = $region33
    $region32: #{tpu_custom_call.1} parent=1 // pred_region
      _
    $region33: #{tpu_custom_call.1} parent=1 // pred_fallthru
      _
    // Predicated region
    $region34: #{tpu_custom_call.1} parent=1 // pred_check
      _
    $region35: #{tpu_custom_call.1} parent=1 // pred_check_branch
      %153 = sbr.rel (0) target = $region37
    $region36: #{tpu_custom_call.1} parent=1 // pred_region
      _
    $region37: #{tpu_custom_call.1} parent=1 // pred_fallthru
      _
    %154 = vsyncpa [#allocation4], 1
    %155 = vsyncpa [#allocation6], 1

// kernel: tpu_custom_call.1
$region0: #{tpu_custom_call.1}
  #allocation0 [shape = 'u32[]', space=smem, size = 0x4, offset = 0x4, fixed_abs, tag = 'smem constant byte address 0x4 - core index']
  #allocation1 [shape = 'u32[144,128]{1,0:T(1,128)}', space=vmem, size = 0x12000, scoped, tag = 'internal scratch']
  #allocation2 [shape = 'f32[1,1]{1,0:T(1,128)S(6)}', space=smem, size = 0x200, scoped, tag = 'scoped memory for tpu_custom_call.1']
  %s0 = inlined_call_operand.hbm [shape: f32[8,32], index: 0, kind: input, shape index: {}]
  %s1 = inlined_call_operand.hbm [shape: f32[32,32], index: 1, kind: input, shape index: {}]
  %s2 = inlined_call_operand.vmem [shape: f32[1,32], index: 2, kind: input, shape index: {}]
  %s3 = inlined_call_operand.vmem [shape: f32[1,32], index: 3, kind: input, shape index: {}]
  %s4 = inlined_call_operand.<no memory space> [shape: f32[1,1], index: 4, kind: input, shape index: {}]
  %s5 = inlined_call_operand.vmem [shape: f32[8,1], index: 5, kind: output, shape index: {}]
  %s6 = sld [smem:[#allocation0]]
  $region38: #{tpu_custom_call.1} parent=0
    _
  %s8 = ssub.s32 1, %s6
  %s9 = scalar_select 0, %s8, %s6
  %10 = sst [smem:[#allocation2]] %s4
  $region1: #{tpu_custom_call.1} parent=0
    #allocation3 [shape = 'u8[4096]{0}', space=vmem, size = 0x1000, scoped, tag = 'input window, operand 0, single buffered']
    #allocation4 [shape = 's32[1]{0}', space=sflag, size = 0x4, scoped, tag = 'scoped memory for tpu_custom_call.1']
    #allocation5 [shape = 'u8[16384]{0}', space=vmem, size = 0x4000, scoped, tag = 'input window, operand 1, single buffered']
    #allocation6 [shape = 's32[1]{0}', space=sflag, size = 0x4, scoped, tag = 'scoped memory for tpu_custom_call.1']
    %11 = vsyncpa [#allocation4], 0
    %12 = vsyncpa [#allocation6], 0
    // Predicated region
    $region2: #{tpu_custom_call.1} parent=1 // pred_check
      _
    $region3: #{tpu_custom_call.1} parent=1 // pred_check_branch
      %14 = sbr.rel (0) target = $region5
    $region4: #{tpu_custom_call.1} parent=1 // pred_region
      %s16 = ssub.s32 128, 128
      %17 = vsyncadd [#allocation4], %s16
      %s19 = sshll.u32 [#allocation3], 4
      %s20 = int_to_ptr.vmem [resolvable:$true] %s19
      %22 = dma.hbm_to_vmem [thread:$0]  %s0, 128, %s20, [#allocation4]
    $region5: #{tpu_custom_call.1} parent=1 // pred_fallthru
      _
    // Predicated region
    $region6: #{tpu_custom_call.1} parent=1 // pred_check
      _
    $region7: #{tpu_custom_call.1} parent=1 // pred_check_branch
      %24 = sbr.rel (0) target = $region9
    $region8: #{tpu_custom_call.1} parent=1 // pred_region
      %s26 = ssub.s32 512, 512
      %27 = vsyncadd [#allocation6], %s26
      %s28 = sshll.u32 [#allocation5], 4
      %s29 = int_to_ptr.vmem [resolvable:$true] %s28
      %34 = dma.hbm_to_vmem [thread:$0]  %s1, 512, %s29, [#allocation6], 128, 128, 8
    $region9: #{tpu_custom_call.1} parent=1 // pred_fallthru
      _
    // Predicated region
    $region10: #{tpu_custom_call.1} parent=1 // pred_check
      _
    $region11: #{tpu_custom_call.1} parent=1 // pred_check_branch
      %36 = sbr.rel (0) target = $region13
    $region12: #{tpu_custom_call.1} parent=1 // pred_region
      _
    $region13: #{tpu_custom_call.1} parent=1 // pred_fallthru
      _
    // Predicated region
    $region14: #{tpu_custom_call.1} parent=1 // pred_check
      _
    $region15: #{tpu_custom_call.1} parent=1 // pred_check_branch
      %38 = sbr.rel (0) target = $region17
    $region16: #{tpu_custom_call.1} parent=1 // pred_region
      _
    $region17: #{tpu_custom_call.1} parent=1 // pred_fallthru
      _
    // Predicated region
    $region18: #{tpu_custom_call.1} parent=1 // pred_check
      _
    $region19: #{tpu_custom_call.1} parent=1 // pred_check_branch
      %40 = sbr.rel (0) target = $region21
    $region20: #{tpu_custom_call.1} parent=1 // pred_region
      _
    $region21: #{tpu_custom_call.1} parent=1 // pred_fallthru
      _
    // Predicated region
    $region22: #{tpu_custom_call.1} parent=1 // pred_check
      _
    $region23: #{tpu_custom_call.1} parent=1 // pred_check_branch
      %42 = sbr.rel (0) target = $region25
    $region24: #{tpu_custom_call.1} parent=1 // pred_region
      %43 = dma.done [#allocation4], 128
    $region25: #{tpu_custom_call.1} parent=1 // pred_fallthru
      _
    // Predicated region
    $region26: #{tpu_custom_call.1} parent=1 // pred_check
      _
    $region27: #{tpu_custom_call.1} parent=1 // pred_check_branch
      %45 = sbr.rel (0) target = $region29
    $region28: #{tpu_custom_call.1} parent=1 // pred_region
      %46 = dma.done [#allocation6], 512
    $region29: #{tpu_custom_call.1} parent=1 // pred_fallthru
      _
    %v47 = vld [vmem:[#allocation3] sm:$0xff]
    %v48 = vld [vmem:[#allocation5] sm:$0xff]
    %v49 = vld [vmem:[#allocation5 + $0x8] sm:$0xff]
    %v50 = vld [vmem:[#allocation5 + $0x10] sm:$0xff]
    %v51 = vld [vmem:[#allocation5 + $0x18] sm:$0xff]
    %v52 = vld [vmem:[%s2] sm:$0x1]
    %v54 = vlaneseq
    %v55 = vshrl.u32 %v54, 7
    %v56 = vsub.s32 0, %v55
    %v57 = vrot.slane %v52, %v56
    %vm59 = vcmask 261120
    %v61 = vsel %vm59, %v47, 0
    %63 = vmatprep.subr.mxu0 0.0
    %64 = vmatpush1.msra.mxu0 %v48
    %65 = vmatprep.subr.mxu0 0.0
    %66 = vmatpush1.msra.mxu0 %v49
    %67 = vmatprep.subr.mxu0 0.0
    %68 = vmatpush1.msra.mxu0 %v50
    %69 = vmatprep.subr.mxu0 0.0
    %70 = vmatpush1.msra.mxu0 %v51
    %71 = vmatprep.subr.mxu0 0.0
    %72 = vmatpush1.msra.mxu0 0.0
    %73 = vmatprep.subr.mxu0 0.0
    %74 = vmatpush1.msra.mxu0 0.0
    %75 = vmatprep.subr.mxu0 0.0
    %76 = vmatpush1.msra.mxu0 0.0
    %77 = vmatprep.subr.mxu0 0.0
    %78 = vmatpush1.msra.mxu0 0.0
    %79 = vmatprep.subr.mxu0 0.0
    %80 = vmatpush1.msra.mxu0 0.0
    %81 = vmatprep.subr.mxu0 0.0
    %82 = vmatpush1.msra.mxu0 0.0
    %83 = vmatprep.subr.mxu0 0.0
    %84 = vmatpush1.msra.mxu0 0.0
    %85 = vmatprep.subr.mxu0 0.0
    %86 = vmatpush1.msra.mxu0 0.0
    %87 = vmatprep.subr.mxu0 0.0
    %88 = vmatpush1.msra.mxu0 0.0
    %89 = vmatprep.subr.mxu0 0.0
    %90 = vmatpush1.msra.mxu0 0.0
    %91 = vmatprep.subr.mxu0 0.0
    %92 = vmatpush1.msra.mxu0 0.0
    %93 = vmatprep.subr.mxu0 0.0
    %94 = vmatpush1.msra.mxu0 0.0
    %95 = vmatprep.subr.mxu0 0.0
    %96 = vmatpush1.msra.mxu0 0.0
    %97 = vmatprep.subr.mxu0 0.0
    %98 = vmatpush1.msra.mxu0 0.0
    %99 = vmatprep.subr.mxu0 0.0
    %100 = vmatpush1.msra.mxu0 0.0
    %101 = vmatprep.subr.mxu0 0.0
    %102 = vmatpush1.msra.mxu0 0.0
    %103 = vmatprep.subr.mxu0 0.0
    %104 = vmatpush1.msra.mxu0 0.0
    %105 = vmatprep.subr.mxu0 0.0
    %106 = vmatpush1.msra.mxu0 0.0
    %107 = vmatprep.subr.mxu0 0.0
    %108 = vmatpush1.msra.mxu0 0.0
    %109 = vmatprep.subr.mxu0 0.0
    %110 = vmatpush1.msra.mxu0 0.0
    %111 = vmatprep.subr.mxu0 0.0
    %112 = vmatpush1.msra.mxu0 0.0
    %113 = vmatprep.subr.mxu0 0.0
    %114 = vmatpush1.msra.mxu0 0.0
    %115 = vmatprep.subr.mxu0 0.0
    %116 = vmatpush1.msra.mxu0 0.0
    %117 = vmatprep.subr.mxu0 0.0
    %118 = vmatpush1.msra.mxu0 0.0
    %119 = vmatprep.subr.mxu0 0.0
    %120 = vmatpush1.msra.mxu0 0.0
    %121 = vmatprep.subr.mxu0 0.0
    %122 = vmatpush1.msra.mxu0 0.0
    %123 = vmatprep.subr.mxu0 0.0
    %124 = vmatpush1.msra.mxu0 0.0
    %125 = vmatprep.subr.mxu0 0.0
    %126 = vmatpush1.msra.mxu0 0.0
    %127 = vmatprep.mubr.f32.mxu0 0.0
    %128 = vmatmul.mubr.f32.gmra.mrb[0].mxu0 %v61
    %v129 = vpop.f32.mrb[0].mxu0
    %v130 = vadd.f32 %v57, %v129
    %v131 = vpop.f32.mrb[0].mxu0
    %132 = vdwg.mxu0
    %v133 = vtanh.pop %v130
    %v134 = vld [vmem:[%s3] sm:$0x1]
    %v136 = vlaneseq
    %v137 = vshrl.u32 %v136, 7
    %v138 = vsub.s32 0, %v137
    %v139 = vrot.slane %v134, %v138
    %v141 = vmul.f32 %v133, %v139
    %v142 = vsel %vm59, %v141, 0.0
    %143 = vadd.xlane.f32.xlu0 %v142
    %v144 = vpop.xlane.xlu0 %143
    %s145 = sld [smem:[#allocation2]]
    %v146 = vstv %s145
    %v147 = vadd.f32 %v144, %v146
    %vm148 = vcmask 7168
    %149 = vst.msk [vmem:[%s5] sm:$0xff] %vm148, %v147
    // Predicated region
    $region30: #{tpu_custom_call.1} parent=1 // pred_check
      _
    $region31: #{tpu_custom_call.1} parent=1 // pred_check_branch
      %151 = sbr.rel (0) target = $region33
    $region32: #{tpu_custom_call.1} parent=1 // pred_region
      _
    $region33: #{tpu_custom_call.1} parent=1 // pred_fallthru
      _
    // Predicated region
    $region34: #{tpu_custom_call.1} parent=1 // pred_check
      _
    $region35: #{tpu_custom_call.1} parent=1 // pred_check_branch
      %153 = sbr.rel (0) target = $region37
    $region36: #{tpu_custom_call.1} parent=1 // pred_region
      _
    $region37: #{tpu_custom_call.1} parent=1 // pred_fallthru
      _
    %154 = vsyncpa [#allocation4], 1
    %155 = vsyncpa [#allocation6], 1

</llo_original>
